<compile_context>
chip_gen: v7x
topology: tpu7x:2x2x1
jax: 0.10.0
libtpu: 0.0.40
codegen_flags: <defaults>
</compile_context>

<pallas_src>
import functools

import jax
import jax.numpy as jnp
from jax.experimental import pallas as pl
from jax.experimental.pallas import tpu as pltpu


def _round_up(n, m):
    return ((n + m - 1) // m) * m


def leaf_kernel(x_ref, wc_ref, bc_ref, wf_ref, bf_ref, c_ref, h_ref):
    x = x_ref[...]                                                  # (tile_b, D)
    # Both matmuls depend only on x (Wc@Wo folded in the wrapper), so the
    # second vmatmul does not wait on the first result draining from the MXU.
    c = jnp.dot(x, wc_ref[...], preferred_element_type=jnp.float32) + bc_ref[...]
    z = jnp.dot(x, wf_ref[...], preferred_element_type=jnp.float32) + bf_ref[...]
    # Elementwise epilogue in f32 (EUP sigmoid/tanh; safe on all generations).
    o = jax.nn.sigmoid(z)
    h = o * jnp.tanh(c)
    c_ref[...] = c.astype(c_ref.dtype)
    h_ref[...] = h.astype(h_ref.dtype)


@functools.partial(jax.jit, static_argnames=("tile_b", "mxu_dtype", "out_dtype"))
def binary_tree_leaf_forward(x, wc, bc, wo, bo, *, tile_b=None,
                             mxu_dtype=None, out_dtype=jnp.float32):
    """x: (B, in_dim); wc: (in_dim, H); bc: (H,); wo: (H, H); bo: (H,).

    Returns (c, h), each (B, H) in `out_dtype`.
    mxu_dtype=jnp.bfloat16 halves MXU-input / weight streaming bytes and is
    valid on v5e/v6e/v7x (accumulation and epilogue stay f32); it does loosen
    accuracy of the user-visible c/h vs an f32 reference.
    out_dtype=jnp.bfloat16 halves output-stream bytes when the consumer
    tolerates it.
    """
    B, D = x.shape
    H = wc.shape[1]
    # Reference module applies ox to c => in_dim must equal hidden_dim.
    assert wc.shape[0] == D, "wc must be (in_dim, hidden)"
    assert wo.shape == (H, H) and D == H, (
        "BinaryTreeLeafModule applies ox to c => in_dim must equal hidden_dim")
    assert bc.shape == (H,) and bo.shape == (H,)

    # --- one-time parameter folding (breaks the c -> z MXU dependency) ------
    w_fused = wc @ wo                  # (D, H)
    b_fused = bc @ wo + bo             # (H,)

    # --- batch tiling: no padding, ragged last block handled by Pallas ------
    if tile_b is None:
        # Big enough to amortize the ~0.35 us per-grid-step overhead, small
        # enough to (a) keep >= 2 grid steps when B allows (v7x two-TC
        # sharding) and (b) stay far below VMEM limits on every generation.
        tile_b = max(8, min(4096, _round_up(pl.cdiv(B, 2), 8)))
    num_steps = pl.cdiv(B, tile_b)     # OOB writes of the last block are dropped

    bc2 = bc.reshape(1, H).astype(jnp.float32)
    bf2 = b_fused.reshape(1, H).astype(jnp.float32)

    x_in, wc_in, wf_in = x, wc, w_fused
    if mxu_dtype is not None:          # bf16 MXU inputs; f32 accumulate
        x_in = x_in.astype(mxu_dtype)
        wc_in = wc_in.astype(mxu_dtype)
        wf_in = wf_in.astype(mxu_dtype)

    in_item = jnp.dtype(x_in.dtype).itemsize
    out_item = jnp.dtype(out_dtype).itemsize
    cost = pl.CostEstimate(
        flops=4 * B * D * H,                              # two matmuls
        transcendentals=3 * B * H,                        # sigmoid + tanh
        bytes_accessed=(x_in.size + wc_in.size + wf_in.size) * in_item
        + (bc2.size + bf2.size) * 4
        + 2 * B * H * out_item,
    )

    # Weights/biases: index_map ignores the batch index -> DMA'd once and
    # VMEM-resident across all grid steps.  Only x / c / h stream per tile,
    # at their true (unpadded) feature width.
    row_spec = pl.BlockSpec((tile_b, D), lambda i: (i, 0))
    weight_spec = pl.BlockSpec((D, H), lambda i: (0, 0))
    bias_spec = pl.BlockSpec((1, H), lambda i: (0, 0))
    out_spec = pl.BlockSpec((tile_b, H), lambda i: (i, 0))

    c_out, h_out = pl.pallas_call(
        leaf_kernel,
        out_shape=(
            jax.ShapeDtypeStruct((B, H), out_dtype),
            jax.ShapeDtypeStruct((B, H), out_dtype),
        ),
        grid=(num_steps,),
        in_specs=[row_spec, weight_spec, bias_spec, weight_spec, bias_spec],
        out_specs=(out_spec, out_spec),
        compiler_params=pltpu.CompilerParams(
            dimension_semantics=("parallel",),    # shards batch across TCs on v7x
            vmem_limit_bytes=64 << 20,            # headroom for large tile_b sweeps (v5e)
        ),
        cost_estimate=cost,
    )(x_in, wc_in, bc2, wf_in, bf2)

    return c_out, h_out


def reference_forward(x, wc, bc, wo, bo):
    c = x @ wc + bc
    o = jax.nn.sigmoid(c @ wo + bo)
    h = o * jnp.tanh(c)
    return c, h


if __name__ == "__main__":
    # in_dim must equal hidden_dim for the reference module to run (ox(c)).
    # B=50 with tile_b=16 -> 4 grid steps, the last one ragged (2 valid rows),
    # exercising both the batch grid and the unpadded ragged-block path.
    B, IN_DIM, HIDDEN = 50, 32, 32

    key = jax.random.PRNGKey(0)
    kx, kwc, kbc, kwo, kbo = jax.random.split(key, 5)

    x = jax.random.normal(kx, (B, IN_DIM), dtype=jnp.float32)
    lim = 1.0 / (IN_DIM ** 0.5)
    wc = jax.random.uniform(kwc, (IN_DIM, HIDDEN), jnp.float32, -lim, lim)
    bc = jax.random.uniform(kbc, (HIDDEN,), jnp.float32, -lim, lim)
    wo = jax.random.uniform(kwo, (HIDDEN, HIDDEN), jnp.float32, -lim, lim)
    bo = jax.random.uniform(kbo, (HIDDEN,), jnp.float32, -lim, lim)

    c, h = binary_tree_leaf_forward(x, wc, bc, wo, bo, tile_b=16)
    jax.block_until_ready((c, h))

    c_ref, h_ref = reference_forward(x, wc, bc, wo, bo)
    assert c.shape == (B, HIDDEN) and h.shape == (B, HIDDEN)
    assert jnp.allclose(c, c_ref, atol=1e-5, rtol=1e-5), "c mismatch"
    assert jnp.allclose(h, h_ref, atol=1e-5, rtol=1e-5), "h mismatch"

    # Also exercise the default (large) tile_b path once.
    c2, h2 = binary_tree_leaf_forward(x, wc, bc, wo, bo)
    jax.block_until_ready((c2, h2))
    assert jnp.allclose(c2, c_ref, atol=1e-5, rtol=1e-5), "c mismatch (default tile)"
    assert jnp.allclose(h2, h_ref, atol=1e-5, rtol=1e-5), "h mismatch (default tile)"

    print("KERNEL_OK")
</pallas_src>

<mosaic_0001>
module attributes {stable_mosaic.version = 11 : i64} {
  func.func @leaf_kernel(%arg0: i32, %arg1: memref<16x32xf32, #tpu.memory_space<vmem>>, %arg2: memref<32x32xf32, #tpu.memory_space<vmem>>, %arg3: memref<1x32xf32, #tpu.memory_space<vmem>>, %arg4: memref<32x32xf32, #tpu.memory_space<vmem>>, %arg5: memref<1x32xf32, #tpu.memory_space<vmem>>, %arg6: memref<16x32xf32, #tpu.memory_space<vmem>>, %arg7: memref<16x32xf32, #tpu.memory_space<vmem>>) attributes {dimension_semantics = [#tpu.dimension_semantics<parallel>], iteration_bounds = array<i64: 4>, scalar_prefetch = 0 : i64, scratch_operands = 0 : i64, tpu.core_type = #tpu.core_type<tc>, window_params = [{transform_indices = @transform_0, window_bounds = array<i64: 16, 32>}, {pipeline_mode = #tpu.pipeline_mode<synchronous>, transform_indices = @transform_1, window_bounds = array<i64: 32, 32>}, {pipeline_mode = #tpu.pipeline_mode<synchronous>, transform_indices = @transform_2, window_bounds = array<i64: 1, 32>}, {pipeline_mode = #tpu.pipeline_mode<synchronous>, transform_indices = @transform_3, window_bounds = array<i64: 32, 32>}, {pipeline_mode = #tpu.pipeline_mode<synchronous>, transform_indices = @transform_4, window_bounds = array<i64: 1, 32>}, {transform_indices = @transform_5, window_bounds = array<i64: 16, 32>}, {transform_indices = @transform_6, window_bounds = array<i64: 16, 32>}]} {
    %c0 = arith.constant 0 : index
    %c0_0 = arith.constant 0 : index
    %0 = vector.load %arg1[%c0, %c0_0] : memref<16x32xf32, #tpu.memory_space<vmem>>, vector<16x32xf32>
    %c0_1 = arith.constant 0 : index
    %c0_2 = arith.constant 0 : index
    %1 = vector.load %arg2[%c0_1, %c0_2] : memref<32x32xf32, #tpu.memory_space<vmem>>, vector<32x32xf32>
    %cst = arith.constant dense<0.000000e+00> : vector<16x32xf32>
    %2 = tpu.matmul %0, %1, %cst {dimension_numbers = #tpu.dot_dimension_numbers<[1], [0], [0], [1], [0, 0, 1, 1], [], []>} : vector<16x32xf32>, vector<32x32xf32>, vector<16x32xf32> -> vector<16x32xf32>
    %c0_3 = arith.constant 0 : index
    %c0_4 = arith.constant 0 : index
    %3 = vector.load %arg3[%c0_3, %c0_4] : memref<1x32xf32, #tpu.memory_space<vmem>>, vector<1x32xf32>
    %4 = vector.broadcast %3 : vector<1x32xf32> to vector<16x32xf32>
    %5 = arith.addf %2, %4 : vector<16x32xf32>
    %c0_5 = arith.constant 0 : index
    %c0_6 = arith.constant 0 : index
    %6 = vector.load %arg4[%c0_5, %c0_6] : memref<32x32xf32, #tpu.memory_space<vmem>>, vector<32x32xf32>
    %cst_7 = arith.constant dense<0.000000e+00> : vector<16x32xf32>
    %7 = tpu.matmul %0, %6, %cst_7 {dimension_numbers = #tpu.dot_dimension_numbers<[1], [0], [0], [1], [0, 0, 1, 1], [], []>} : vector<16x32xf32>, vector<32x32xf32>, vector<16x32xf32> -> vector<16x32xf32>
    %c0_8 = arith.constant 0 : index
    %c0_9 = arith.constant 0 : index
    %8 = vector.load %arg5[%c0_8, %c0_9] : memref<1x32xf32, #tpu.memory_space<vmem>>, vector<1x32xf32>
    %9 = vector.broadcast %8 : vector<1x32xf32> to vector<16x32xf32>
    %10 = arith.addf %7, %9 : vector<16x32xf32>
    %11 = arith.negf %10 : vector<16x32xf32>
    %12 = math.exp %11 : vector<16x32xf32>
    %cst_10 = arith.constant 1.000000e+00 : f32
    %13 = vector.broadcast %cst_10 : f32 to vector<16x32xf32>
    %14 = arith.addf %13, %12 : vector<16x32xf32>
    %15 = arith.divf %13, %14 : vector<16x32xf32>
    %16 = math.tanh %5 : vector<16x32xf32>
    %17 = arith.mulf %15, %16 : vector<16x32xf32>
    %c0_11 = arith.constant 0 : index
    %c0_12 = arith.constant 0 : index
    %18 = vector.load %arg6[%c0_11, %c0_12] : memref<16x32xf32, #tpu.memory_space<vmem>>, vector<16x32xf32>
    tpu.vector_store %arg6[%c0_11, %c0_12], %5 {strides = array<i32>} : memref<16x32xf32, #tpu.memory_space<vmem>>, vector<16x32xf32>,
    %c0_13 = arith.constant 0 : index
    %c0_14 = arith.constant 0 : index
    %19 = vector.load %arg7[%c0_13, %c0_14] : memref<16x32xf32, #tpu.memory_space<vmem>>, vector<16x32xf32>
    tpu.vector_store %arg7[%c0_13, %c0_14], %17 {strides = array<i32>} : memref<16x32xf32, #tpu.memory_space<vmem>>, vector<16x32xf32>,
    return
  }
  func.func @transform_0(%arg0: i32) -> (i32, i32) {
    %c0_i32 = arith.constant 0 : i32
    %c0_i32_0 = arith.constant 0 : i32
    return %arg0, %c0_i32 : i32, i32
  }
  func.func @transform_1(%arg0: i32) -> (i32, i32) {
    %c0_i32 = arith.constant 0 : i32
    %c0_i32_0 = arith.constant 0 : i32
    %c0_i32_1 = arith.constant 0 : i32
    return %c0_i32, %c0_i32_0 : i32, i32
  }
  func.func @transform_2(%arg0: i32) -> (i32, i32) {
    %c0_i32 = arith.constant 0 : i32
    %c0_i32_0 = arith.constant 0 : i32
    %c0_i32_1 = arith.constant 0 : i32
    return %c0_i32, %c0_i32_0 : i32, i32
  }
  func.func @transform_3(%arg0: i32) -> (i32, i32) {
    %c0_i32 = arith.constant 0 : i32
    %c0_i32_0 = arith.constant 0 : i32
    %c0_i32_1 = arith.constant 0 : i32
    return %c0_i32, %c0_i32_0 : i32, i32
  }
  func.func @transform_4(%arg0: i32) -> (i32, i32) {
    %c0_i32 = arith.constant 0 : i32
    %c0_i32_0 = arith.constant 0 : i32
    %c0_i32_1 = arith.constant 0 : i32
    return %c0_i32, %c0_i32_0 : i32, i32
  }
  func.func @transform_5(%arg0: i32) -> (i32, i32) {
    %c0_i32 = arith.constant 0 : i32
    %c0_i32_0 = arith.constant 0 : i32
    return %arg0, %c0_i32 : i32, i32
  }
  func.func @transform_6(%arg0: i32) -> (i32, i32) {
    %c0_i32 = arith.constant 0 : i32
    %c0_i32_0 = arith.constant 0 : i32
    return %arg0, %c0_i32 : i32, i32
  }
}

</mosaic_0001>

<llo_original>
// kernel: binary_tree_leaf_forward.1
$region0: #{binary_tree_leaf_forward.1}
  #allocation0 [shape = 'u32[]', space=smem, size = 0x4, offset = 0x4, fixed_abs, tag = 'smem constant byte address 0x4 - core index']
  #allocation1 [shape = 'u32[144,128]{1,0:T(1,128)}', space=vmem, size = 0x12000, scoped, tag = 'internal scratch']
  %s0 = inlined_call_operand.hbm [shape: f32[50,32], index: 0, kind: input, shape index: {}]
  %s1 = inlined_call_operand.hbm [shape: f32[32,32], index: 1, kind: input, shape index: {}]
  %s2 = inlined_call_operand.hbm [shape: f32[1,32], index: 2, kind: input, shape index: {}]
  %s3 = inlined_call_operand.hbm [shape: f32[32,32], index: 3, kind: input, shape index: {}]
  %s4 = inlined_call_operand.hbm [shape: f32[1,32], index: 4, kind: input, shape index: {}]
  %s5 = inlined_call_operand.hbm [shape: f32[50,32], index: 5, kind: output, shape index: {0}]
  %s6 = inlined_call_operand.hbm [shape: f32[50,32], index: 6, kind: output, shape index: {1}]
  %7 = xla_tuple %s5, %s6
  %s8 = sld [smem:[#allocation0]]
  $region81: #{binary_tree_leaf_forward.1} parent=0
    _
  %s10 = ssub.s32 1, %s8
  %s11 = scalar_select 0, %s10, %s8
  $region1: #{binary_tree_leaf_forward.1} parent=0
    #allocation2 [shape = 'u8[16384]{0}', space=vmem, size = 0x4000, scoped, tag = 'input window, operand 0']
    #allocation3 [shape = 's32[2]{0}', space=sflag, size = 0x8, scoped, tag = 'scoped memory for binary_tree_leaf_forward.1']
    #allocation4 [shape = 's32[2]{0}', space=sflag, size = 0x8, scoped, tag = 'scoped memory for binary_tree_leaf_forward.1']
    #allocation5 [shape = 'u8[16384]{0}', space=vmem, size = 0x4000, scoped, tag = 'input window, operand 1, single buffered']
    #allocation6 [shape = 's32[1]{0}', space=sflag, size = 0x4, scoped, tag = 'scoped memory for binary_tree_leaf_forward.1']
    #allocation7 [shape = 'u8[512]{0}', space=vmem, size = 0x400, scoped, tag = 'input window, operand 2, single buffered']
    #allocation8 [shape = 'u8[16384]{0}', space=vmem, size = 0x4000, scoped, tag = 'input window, operand 3, single buffered']
    #allocation9 [shape = 's32[1]{0}', space=sflag, size = 0x4, scoped, tag = 'scoped memory for binary_tree_leaf_forward.1']
    #allocation10 [shape = 'u8[512]{0}', space=vmem, size = 0x400, scoped, tag = 'input window, operand 4, single buffered']
    #allocation11 [shape = 'u8[16384]{0}', space=vmem, size = 0x4000, scoped, tag = 'output window, operand 0']
    #allocation12 [shape = 'u8[16384]{0}', space=vmem, size = 0x4000, scoped, tag = 'output window, operand 1']
    #allocation13 [shape = 's32[2]{0}', space=sflag, size = 0x8, scoped, tag = 'scoped memory for binary_tree_leaf_forward.1']
    %12 = vsyncpa [#allocation3], 0
    %s13 = scalar_lea.sflag [#allocation3], 1
    %14 = vsyncpa %s13, 0
    %15 = vsyncpa [#allocation6], 0
    %16 = vsyncpa [#allocation9], 0
    %17 = vsyncpa [#allocation4], 0
    %s18 = scalar_lea.sflag [#allocation4], 1
    %19 = vsyncpa %s18, 0
    %20 = vsyncpa [#allocation13], 0
    %s21 = scalar_lea.sflag [#allocation13], 1
    %22 = vsyncpa %s21, 0
    loop: start=0, step=1, limit=6
    $region2: #{binary_tree_leaf_forward.1} parent=1 // loop_pre_header
      _
    $region3: #{binary_tree_leaf_forward.1} parent=1 // loop_header
      %s24 = sphi 0, %s28
      %p25 = scmp.ge.s32.totalorder %s24, 6
      %s34 = sphi 0, %s36
      %s37 = sphi 0, %s34
      %s38 = sphi 0, %s37
      %s54 = sphi 0, %s38
      %s58 = sphi 0, %s58
      %s60 = sphi 0, %s58
      %s61 = sphi 0, %s60
      %s75 = sphi 0, %s61
      %s79 = sphi 0, %s79
      %s81 = sphi 0, %s79
      %s82 = sphi 0, %s81
      %s96 = sphi 0, %s82
      %s100 = sphi 0, %s100
      %s102 = sphi 0, %s100
      %s103 = sphi 0, %s102
      %s117 = sphi 0, %s103
      %s121 = sphi 0, %s121
      %s123 = sphi 0, %s121
      %s124 = sphi 0, %s123
      %s138 = sphi 0, %s124
      %s144 = sphi 0, %s146
      %s147 = sphi 0, %s144
      %s148 = sphi 0, %s147
      %s164 = sphi 0, %s148
      %s170 = sphi 0, %s172
      %s173 = sphi 0, %s170
      %s174 = sphi 0, %s173
      %s190 = sphi 0, %s174
    $region4: #{binary_tree_leaf_forward.1} parent=1 // loop_header_branch
      %27 = sbr.rel (%p25) target = $region8
    $region5: #{binary_tree_leaf_forward.1} parent=1 // loop_body
      %s29 = ssub.s32 %s24, 1
      %s30 = ssub.s32 %s24, 2
      %s31 = sadd.s32 %s24, 1
      %s32 = ssub.s32 %s24, %s31
      %p33 = scmp.eq.s32.totalorder %s32, 0
      %s35 = sadd.s32 %s34, 1
      %s36 = scalar_select %p33, %s34, %s35
      %p39 = pneg %p33
      %p40 = scmp.eq.s32.totalorder %s24, 3
      %p41 = por %p39, %p40
      %p42 = scmp.ne.s32.totalorder %s34, %s37
      %p43 = scmp.eq.s32.totalorder %s24, 0
      %p44 = por %p42, %p43
      %p45 = scmp.ne.s32.totalorder %s34, %s37
      %p46 = scmp.eq.s32.totalorder %s29, 3
      %p47 = por %p45, %p46
      %p48 = scmp.ne.s32.totalorder %s37, %s38
      %p49 = scmp.eq.s32.totalorder %s29, 0
      %p50 = por %p48, %p49
      %p51 = scmp.ne.s32.totalorder %s37, %s38
      %p52 = scmp.eq.s32.totalorder %s30, 3
      %p53 = por %p51, %p52
      %p55 = scmp.ne.s32.totalorder %s38, %s54
      %p56 = scmp.eq.s32.totalorder %s30, 0
      %p57 = por %p55, %p56
      %s59 = sadd.s32 %s58, 1
      %p62 = scmp.eq.s32.totalorder %s24, 3
      %p63 = scmp.ne.s32.totalorder %s58, %s60
      %p64 = scmp.eq.s32.totalorder %s24, 0
      %p65 = por %p63, %p64
      %p66 = scmp.ne.s32.totalorder %s58, %s60
      %p67 = scmp.eq.s32.totalorder %s29, 3
      %p68 = por %p66, %p67
      %p69 = scmp.ne.s32.totalorder %s60, %s61
      %p70 = scmp.eq.s32.totalorder %s29, 0
      %p71 = por %p69, %p70
      %p72 = scmp.ne.s32.totalorder %s60, %s61
      %p73 = scmp.eq.s32.totalorder %s30, 3
      %p74 = por %p72, %p73
      %p76 = scmp.ne.s32.totalorder %s61, %s75
      %p77 = scmp.eq.s32.totalorder %s30, 0
      %p78 = por %p76, %p77
      %s80 = sadd.s32 %s79, 1
      %p83 = scmp.eq.s32.totalorder %s24, 3
      %p84 = scmp.ne.s32.totalorder %s79, %s81
      %p85 = scmp.eq.s32.totalorder %s24, 0
      %p86 = por %p84, %p85
      %p87 = scmp.ne.s32.totalorder %s79, %s81
      %p88 = scmp.eq.s32.totalorder %s29, 3
      %p89 = por %p87, %p88
      %p90 = scmp.ne.s32.totalorder %s81, %s82
      %p91 = scmp.eq.s32.totalorder %s29, 0
      %p92 = por %p90, %p91
      %p93 = scmp.ne.s32.totalorder %s81, %s82
      %p94 = scmp.eq.s32.totalorder %s30, 3
      %p95 = por %p93, %p94
      %p97 = scmp.ne.s32.totalorder %s82, %s96
      %p98 = scmp.eq.s32.totalorder %s30, 0
      %p99 = por %p97, %p98
      %s101 = sadd.s32 %s100, 1
      %p104 = scmp.eq.s32.totalorder %s24, 3
      %p105 = scmp.ne.s32.totalorder %s100, %s102
      %p106 = scmp.eq.s32.totalorder %s24, 0
      %p107 = por %p105, %p106
      %p108 = scmp.ne.s32.totalorder %s100, %s102
      %p109 = scmp.eq.s32.totalorder %s29, 3
      %p110 = por %p108, %p109
      %p111 = scmp.ne.s32.totalorder %s102, %s103
      %p112 = scmp.eq.s32.totalorder %s29, 0
      %p113 = por %p111, %p112
      %p114 = scmp.ne.s32.totalorder %s102, %s103
      %p115 = scmp.eq.s32.totalorder %s30, 3
      %p116 = por %p114, %p115
      %p118 = scmp.ne.s32.totalorder %s103, %s117
      %p119 = scmp.eq.s32.totalorder %s30, 0
      %p120 = por %p118, %p119
      %s122 = sadd.s32 %s121, 1
      %p125 = scmp.eq.s32.totalorder %s24, 3
      %p126 = scmp.ne.s32.totalorder %s121, %s123
      %p127 = scmp.eq.s32.totalorder %s24, 0
      %p128 = por %p126, %p127
      %p129 = scmp.ne.s32.totalorder %s121, %s123
      %p130 = scmp.eq.s32.totalorder %s29, 3
      %p131 = por %p129, %p130
      %p132 = scmp.ne.s32.totalorder %s123, %s124
      %p133 = scmp.eq.s32.totalorder %s29, 0
      %p134 = por %p132, %p133
      %p135 = scmp.ne.s32.totalorder %s123, %s124
      %p136 = scmp.eq.s32.totalorder %s30, 3
      %p137 = por %p135, %p136
      %p139 = scmp.ne.s32.totalorder %s124, %s138
      %p140 = scmp.eq.s32.totalorder %s30, 0
      %p141 = por %p139, %p140
      %s142 = ssub.s32 %s24, %s31
      %p143 = scmp.eq.s32.totalorder %s142, 0
      %s145 = sadd.s32 %s144, 1
      %s146 = scalar_select %p143, %s144, %s145
      %p149 = pneg %p143
      %p150 = scmp.eq.s32.totalorder %s24, 3
      %p151 = por %p149, %p150
      %p152 = scmp.ne.s32.totalorder %s144, %s147
      %p153 = scmp.eq.s32.totalorder %s24, 0
      %p154 = por %p152, %p153
      %p155 = scmp.ne.s32.totalorder %s144, %s147
      %p156 = scmp.eq.s32.totalorder %s29, 3
      %p157 = por %p155, %p156
      %p158 = scmp.ne.s32.totalorder %s147, %s148
      %p159 = scmp.eq.s32.totalorder %s29, 0
      %p160 = por %p158, %p159
      %p161 = scmp.ne.s32.totalorder %s147, %s148
      %p162 = scmp.eq.s32.totalorder %s30, 3
      %p163 = por %p161, %p162
      %p165 = scmp.ne.s32.totalorder %s148, %s164
      %p166 = scmp.eq.s32.totalorder %s30, 0
      %p167 = por %p165, %p166
      %s168 = ssub.s32 %s24, %s31
      %p169 = scmp.eq.s32.totalorder %s168, 0
      %s171 = sadd.s32 %s170, 1
      %s172 = scalar_select %p169, %s170, %s171
      %p175 = pneg %p169
      %p176 = scmp.eq.s32.totalorder %s24, 3
      %p177 = por %p175, %p176
      %p178 = scmp.ne.s32.totalorder %s170, %s173
      %p179 = scmp.eq.s32.totalorder %s24, 0
      %p180 = por %p178, %p179
      %p181 = scmp.ne.s32.totalorder %s170, %s173
      %p182 = scmp.eq.s32.totalorder %s29, 3
      %p183 = por %p181, %p182
      %p184 = scmp.ne.s32.totalorder %s173, %s174
      %p185 = scmp.eq.s32.totalorder %s29, 0
      %p186 = por %p184, %p185
      %p187 = scmp.ne.s32.totalorder %s173, %s174
      %p188 = scmp.eq.s32.totalorder %s30, 3
      %p189 = por %p187, %p188
      %p191 = scmp.ne.s32.totalorder %s174, %s190
      %p192 = scmp.eq.s32.totalorder %s30, 0
      %p193 = por %p191, %p192
      %p194 = scmp.le.s32.totalorder 1, %s24
      %p195 = scmp.lt.s32.totalorder %s24, 5
      %p196 = pnand %p194, %p195
      %p197 = pneg %p196
      // Predicated region
      $region9: #{binary_tree_leaf_forward.1} parent=5 // pred_check
        _
      $region10: #{binary_tree_leaf_forward.1} parent=5 // pred_check_branch
        %199 = sbr.rel (%p196) target = $region12
      $region11: #{binary_tree_leaf_forward.1} parent=5 // pred_region
        %s200 = ssub.s32 %s24, 1
        // Predicated region
        $region13: #{binary_tree_leaf_forward.1} parent=11 // pred_check
          %p201 = pneg %p71
        $region14: #{binary_tree_leaf_forward.1} parent=11 // pred_check_branch
          %203 = sbr.rel (%p201) target = $region16
        $region15: #{binary_tree_leaf_forward.1} parent=11 // pred_region
          %s205 = ssub.s32 512, 512
          %206 = vsyncadd [#allocation6], %s205
          %s207 = sshll.u32 [#allocation5], 4
          %s208 = int_to_ptr.vmem [resolvable:$true] %s207
          %213 = dma.hbm_to_vmem [thread:$0]  %s1, 512, %s208, [#allocation6], 128, 128, 8
        $region16: #{binary_tree_leaf_forward.1} parent=11 // pred_fallthru
          _
        // Predicated region
        $region17: #{binary_tree_leaf_forward.1} parent=11 // pred_check
          %p214 = pneg %p92
        $region18: #{binary_tree_leaf_forward.1} parent=11 // pred_check_branch
          %216 = sbr.rel (%p214) target = $region20
        $region19: #{binary_tree_leaf_forward.1} parent=11 // pred_region
          %s218 = ssub.s32 16, 16
          %219 = vsyncadd [#allocation6], %s218
          %s221 = sshll.u32 [#allocation7], 4
          %s222 = int_to_ptr.vmem [resolvable:$true] %s221
          %224 = dma.hbm_to_vmem [thread:$0]  %s2, 16, %s222, [#allocation6]
        $region20: #{binary_tree_leaf_forward.1} parent=11 // pred_fallthru
          _
        // Predicated region
        $region21: #{binary_tree_leaf_forward.1} parent=11 // pred_check
          %p225 = pneg %p113
        $region22: #{binary_tree_leaf_forward.1} parent=11 // pred_check_branch
          %227 = sbr.rel (%p225) target = $region24
        $region23: #{binary_tree_leaf_forward.1} parent=11 // pred_region
          %s229 = ssub.s32 512, 512
          %230 = vsyncadd [#allocation9], %s229
          %s231 = sshll.u32 [#allocation8], 4
          %s232 = int_to_ptr.vmem [resolvable:$true] %s231
          %237 = dma.hbm_to_vmem [thread:$0]  %s3, 512, %s232, [#allocation9], 128, 128, 8
        $region24: #{binary_tree_leaf_forward.1} parent=11 // pred_fallthru
          _
        // Predicated region
        $region25: #{binary_tree_leaf_forward.1} parent=11 // pred_check
          %p238 = pneg %p134
        $region26: #{binary_tree_leaf_forward.1} parent=11 // pred_check_branch
          %240 = sbr.rel (%p238) target = $region28
        $region27: #{binary_tree_leaf_forward.1} parent=11 // pred_region
          %s242 = ssub.s32 16, 16
          %243 = vsyncadd [#allocation9], %s242
          %s245 = sshll.u32 [#allocation10], 4
          %s246 = int_to_ptr.vmem [resolvable:$true] %s245
          %248 = dma.hbm_to_vmem [thread:$0]  %s4, 16, %s246, [#allocation9]
        $region28: #{binary_tree_leaf_forward.1} parent=11 // pred_fallthru
          _
      $region12: #{binary_tree_leaf_forward.1} parent=5 // pred_fallthru
        _
      %p249 = scmp.lt.s32.totalorder %s24, 4
      // Predicated region
      $region29: #{binary_tree_leaf_forward.1} parent=5 // pred_check
        %p250 = pneg %p249
      $region30: #{binary_tree_leaf_forward.1} parent=5 // pred_check_branch
        %252 = sbr.rel (%p250) target = $region32
      $region31: #{binary_tree_leaf_forward.1} parent=5 // pred_region
        // Predicated region
        $region33: #{binary_tree_leaf_forward.1} parent=31 // pred_check
          %p253 = pneg %p44
        $region34: #{binary_tree_leaf_forward.1} parent=31 // pred_check_branch
          %255 = sbr.rel (%p253) target = $region36
        $region35: #{binary_tree_leaf_forward.1} parent=31 // pred_region
          %s256 = sand.u32 %s34, 1
          %s257 = scalar_lea.sflag [#allocation3], %s256
          %s258 = sand.u32 %s34, 1
          %s259 = smul.addr %s258, 16
          %s260 = scalar_lea.vmem [#allocation2], %s259
          %s261 = smul.u32 2, %s24
          %s262 = ssub.s32 7, %s261
          %p263 = scmp.lt.s32.totalorder %s262, 2
          %s264 = scalar_select %p263, %s262, 2
          %s265 = smul.u32 128, %s264
          %s267 = ssub.s32 256, %s265
          %268 = vsyncadd %s257, %s267
          %p269 = scmp.ne.s32.totalorder 0, %s265
          %s270 = smul.addr %s261, 128
          %s271 = scalar_lea.hbm %s0, %s270
          %s272 = smul.u32 8, %s264
          %s273 = sshll.u32 %s260, 4
          %s274 = int_to_ptr.vmem [resolvable:$true] %s273
          %s275 = sshll.u32 %s272, 4
          %279 = dma.hbm_to_vmem [thread:$0]  (%p269), %s271, %s275, %s274, %s257, 128, 128, 8
        $region36: #{binary_tree_leaf_forward.1} parent=31 // pred_fallthru
          _
      $region32: #{binary_tree_leaf_forward.1} parent=5 // pred_fallthru
        _
      %p280 = scmp.le.s32.totalorder 1, %s24
      %p281 = scmp.lt.s32.totalorder %s24, 5
      %p282 = pnand %p280, %p281
      %p283 = pneg %p282
      // Predicated region
      $region37: #{binary_tree_leaf_forward.1} parent=5 // pred_check
        _
      $region38: #{binary_tree_leaf_forward.1} parent=5 // pred_check_branch
        %285 = sbr.rel (%p282) target = $region40
      $region39: #{binary_tree_leaf_forward.1} parent=5 // pred_region
        %s286 = ssub.s32 %s24, 1
        %s287 = sand.u32 %s37, 1
        %s288 = scalar_lea.sflag [#allocation3], %s287
        %s289 = sand.u32 %s37, 1
        %s290 = smul.addr %s289, 16
        %s291 = scalar_lea.vmem [#allocation2], %s290
        // Predicated region
        $region41: #{binary_tree_leaf_forward.1} parent=39 // pred_check
          %p292 = pneg %p50
        $region42: #{binary_tree_leaf_forward.1} parent=39 // pred_check_branch
          %294 = sbr.rel (%p292) target = $region44
        $region43: #{binary_tree_leaf_forward.1} parent=39 // pred_region
          %295 = dma.done %s288, 256
        $region44: #{binary_tree_leaf_forward.1} parent=39 // pred_fallthru
          _
        // Predicated region
        $region45: #{binary_tree_leaf_forward.1} parent=39 // pred_check
          %p296 = pneg %p71
        $region46: #{binary_tree_leaf_forward.1} parent=39 // pred_check_branch
          %298 = sbr.rel (%p296) target = $region48
        $region47: #{binary_tree_leaf_forward.1} parent=39 // pred_region
          %299 = dma.done [#allocation6], 512
        $region48: #{binary_tree_leaf_forward.1} parent=39 // pred_fallthru
          _
        // Predicated region
        $region49: #{binary_tree_leaf_forward.1} parent=39 // pred_check
          %p300 = pneg %p92
        $region50: #{binary_tree_leaf_forward.1} parent=39 // pred_check_branch
          %302 = sbr.rel (%p300) target = $region52
        $region51: #{binary_tree_leaf_forward.1} parent=39 // pred_region
          %303 = dma.done [#allocation6], 16
        $region52: #{binary_tree_leaf_forward.1} parent=39 // pred_fallthru
          _
        // Predicated region
        $region53: #{binary_tree_leaf_forward.1} parent=39 // pred_check
          %p304 = pneg %p113
        $region54: #{binary_tree_leaf_forward.1} parent=39 // pred_check_branch
          %306 = sbr.rel (%p304) target = $region56
        $region55: #{binary_tree_leaf_forward.1} parent=39 // pred_region
          %307 = dma.done [#allocation9], 512
        $region56: #{binary_tree_leaf_forward.1} parent=39 // pred_fallthru
          _
        // Predicated region
        $region57: #{binary_tree_leaf_forward.1} parent=39 // pred_check
          %p308 = pneg %p134
        $region58: #{binary_tree_leaf_forward.1} parent=39 // pred_check_branch
          %310 = sbr.rel (%p308) target = $region60
        $region59: #{binary_tree_leaf_forward.1} parent=39 // pred_region
          %311 = dma.done [#allocation9], 16
        $region60: #{binary_tree_leaf_forward.1} parent=39 // pred_fallthru
          _
        %s312 = sand.u32 %s37, 1
        %s313 = scalar_lea.sflag [#allocation3], %s312
        %s314 = sand.u32 %s37, 1
        %s315 = smul.addr %s314, 16
        %s316 = scalar_lea.vmem [#allocation2], %s315
        %p317 = pneg %p50
        %p318 = pneg %p47
        %p319 = pneg %p71
        %p320 = pneg %p68
        %p321 = pneg %p92
        %p322 = pneg %p89
        %p323 = pneg %p113
        %p324 = pneg %p110
        %p325 = pneg %p134
        %p326 = pneg %p131
        %p327 = pneg %p160
        %p328 = pneg %p157
        %s329 = sand.u32 %s147, 1
        %s330 = scalar_lea.sflag [#allocation4], %s329
        %s331 = sand.u32 %s147, 1
        %s332 = smul.addr %s331, 16
        %s333 = scalar_lea.vmem [#allocation11], %s332
        %p334 = pneg %p186
        %p335 = pneg %p183
        %s336 = sand.u32 %s173, 1
        %s337 = scalar_lea.sflag [#allocation13], %s336
        %s338 = sand.u32 %s173, 1
        %s339 = smul.addr %s338, 16
        %s340 = scalar_lea.vmem [#allocation12], %s339
        %s341 = smul.u32 2, %s29
        %s342 = ssub.s32 7, %s341
        %p343 = scmp.lt.s32.totalorder %s342, 2
        %s344 = scalar_select %p343, %s342, 2
        %s345 = smul.u32 128, %s344
        %s346 = smul.u32 2, %s29
        %s347 = ssub.s32 7, %s346
        %p348 = scmp.lt.s32.totalorder %s347, 2
        %s349 = scalar_select %p348, %s347, 2
        %s350 = smul.u32 128, %s349
        %s351 = smul.u32 2, %s29
        %s352 = ssub.s32 7, %s351
        %p353 = scmp.lt.s32.totalorder %s352, 2
        %s354 = scalar_select %p353, %s352, 2
        %s355 = smul.u32 128, %s354
        %v356 = vld [vmem:[%s291] sm:$0xff]
        %v357 = vld [vmem:[%s291 + $0x8] sm:$0xff]
        %v358 = vld [vmem:[#allocation5] sm:$0xff]
        %v359 = vld [vmem:[#allocation5 + $0x8] sm:$0xff]
        %v360 = vld [vmem:[#allocation5 + $0x10] sm:$0xff]
        %v361 = vld [vmem:[#allocation5 + $0x18] sm:$0xff]
        %v362 = vld [vmem:[#allocation7] sm:$0x1]
        %v364 = vlaneseq
        %v365 = vshrl.u32 %v364, 7
        %v366 = vsub.s32 0, %v365
        %v367 = vrot.slane %v362, %v366
        %vm369 = vcmask 261120
        %v371 = vsel %vm369, %v356, 0
        %v374 = vsel %vm369, %v357, 0
        %376 = vmatprep.subr.mxu0 0.0
        %377 = vmatpush1.msra.mxu0 %v358
        %378 = vmatprep.subr.mxu0 0.0
        %379 = vmatpush1.msra.mxu0 %v359
        %380 = vmatprep.subr.mxu0 0.0
        %381 = vmatpush1.msra.mxu0 %v360
        %382 = vmatprep.subr.mxu0 0.0
        %383 = vmatpush1.msra.mxu0 %v361
        %384 = vmatprep.subr.mxu0 0.0
        %385 = vmatpush1.msra.mxu0 0.0
        %386 = vmatprep.subr.mxu0 0.0
        %387 = vmatpush1.msra.mxu0 0.0
        %388 = vmatprep.subr.mxu0 0.0
        %389 = vmatpush1.msra.mxu0 0.0
        %390 = vmatprep.subr.mxu0 0.0
        %391 = vmatpush1.msra.mxu0 0.0
        %392 = vmatprep.subr.mxu0 0.0
        %393 = vmatpush1.msra.mxu0 0.0
        %394 = vmatprep.subr.mxu0 0.0
        %395 = vmatpush1.msra.mxu0 0.0
        %396 = vmatprep.subr.mxu0 0.0
        %397 = vmatpush1.msra.mxu0 0.0
        %398 = vmatprep.subr.mxu0 0.0
        %399 = vmatpush1.msra.mxu0 0.0
        %400 = vmatprep.subr.mxu0 0.0
        %401 = vmatpush1.msra.mxu0 0.0
        %402 = vmatprep.subr.mxu0 0.0
        %403 = vmatpush1.msra.mxu0 0.0
        %404 = vmatprep.subr.mxu0 0.0
        %405 = vmatpush1.msra.mxu0 0.0
        %406 = vmatprep.subr.mxu0 0.0
        %407 = vmatpush1.msra.mxu0 0.0
        %408 = vmatprep.subr.mxu0 0.0
        %409 = vmatpush1.msra.mxu0 0.0
        %410 = vmatprep.subr.mxu0 0.0
        %411 = vmatpush1.msra.mxu0 0.0
        %412 = vmatprep.subr.mxu0 0.0
        %413 = vmatpush1.msra.mxu0 0.0
        %414 = vmatprep.subr.mxu0 0.0
        %415 = vmatpush1.msra.mxu0 0.0
        %416 = vmatprep.subr.mxu0 0.0
        %417 = vmatpush1.msra.mxu0 0.0
        %418 = vmatprep.subr.mxu0 0.0
        %419 = vmatpush1.msra.mxu0 0.0
        %420 = vmatprep.subr.mxu0 0.0
        %421 = vmatpush1.msra.mxu0 0.0
        %422 = vmatprep.subr.mxu0 0.0
        %423 = vmatpush1.msra.mxu0 0.0
        %424 = vmatprep.subr.mxu0 0.0
        %425 = vmatpush1.msra.mxu0 0.0
        %426 = vmatprep.subr.mxu0 0.0
        %427 = vmatpush1.msra.mxu0 0.0
        %428 = vmatprep.subr.mxu0 0.0
        %429 = vmatpush1.msra.mxu0 0.0
        %430 = vmatprep.subr.mxu0 0.0
        %431 = vmatpush1.msra.mxu0 0.0
        %432 = vmatprep.subr.mxu0 0.0
        %433 = vmatpush1.msra.mxu0 0.0
        %434 = vmatprep.subr.mxu0 0.0
        %435 = vmatpush1.msra.mxu0 0.0
        %436 = vmatprep.subr.mxu0 0.0
        %437 = vmatpush1.msra.mxu0 0.0
        %438 = vmatprep.subr.mxu0 0.0
        %439 = vmatpush1.msra.mxu0 0.0
        %440 = vmatprep.mubr.f32.mxu0 0.0
        %441 = vmatmul.mubr.f32.gmra.mrb[0].mxu0 %v371
        %v442 = vpop.f32.mrb[0].mxu0
        %v443 = vadd.f32 %v367, %v442
        %v444 = vpop.f32.mrb[0].mxu0
        %445 = vmatprep.mubr.f32.mxu0 0.0
        %446 = vmatmul.mubr.f32.gmra.mrb[0].mxu0 %v374
        %v447 = vpop.f32.mrb[0].mxu0
        %v448 = vadd.f32 %v367, %v447
        %v449 = vpop.f32.mrb[0].mxu0
        %450 = vdwg.mxu0
        %v451 = vld [vmem:[#allocation8] sm:$0xff]
        %v452 = vld [vmem:[#allocation8 + $0x8] sm:$0xff]
        %v453 = vld [vmem:[#allocation8 + $0x10] sm:$0xff]
        %v454 = vld [vmem:[#allocation8 + $0x18] sm:$0xff]
        %v455 = vld [vmem:[#allocation10] sm:$0x1]
        %v457 = vlaneseq
        %v458 = vshrl.u32 %v457, 7
        %v459 = vsub.s32 0, %v458
        %v460 = vrot.slane %v455, %v459
        %462 = vmatprep.subr.mxu0 0.0
        %463 = vmatpush1.msra.mxu0 %v451
        %464 = vmatprep.subr.mxu0 0.0
        %465 = vmatpush1.msra.mxu0 %v452
        %466 = vmatprep.subr.mxu0 0.0
        %467 = vmatpush1.msra.mxu0 %v453
        %468 = vmatprep.subr.mxu0 0.0
        %469 = vmatpush1.msra.mxu0 %v454
        %470 = vmatprep.subr.mxu0 0.0
        %471 = vmatpush1.msra.mxu0 0.0
        %472 = vmatprep.subr.mxu0 0.0
        %473 = vmatpush1.msra.mxu0 0.0
        %474 = vmatprep.subr.mxu0 0.0
        %475 = vmatpush1.msra.mxu0 0.0
        %476 = vmatprep.subr.mxu0 0.0
        %477 = vmatpush1.msra.mxu0 0.0
        %478 = vmatprep.subr.mxu0 0.0
        %479 = vmatpush1.msra.mxu0 0.0
        %480 = vmatprep.subr.mxu0 0.0
        %481 = vmatpush1.msra.mxu0 0.0
        %482 = vmatprep.subr.mxu0 0.0
        %483 = vmatpush1.msra.mxu0 0.0
        %484 = vmatprep.subr.mxu0 0.0
        %485 = vmatpush1.msra.mxu0 0.0
        %486 = vmatprep.subr.mxu0 0.0
        %487 = vmatpush1.msra.mxu0 0.0
        %488 = vmatprep.subr.mxu0 0.0
        %489 = vmatpush1.msra.mxu0 0.0
        %490 = vmatprep.subr.mxu0 0.0
        %491 = vmatpush1.msra.mxu0 0.0
        %492 = vmatprep.subr.mxu0 0.0
        %493 = vmatpush1.msra.mxu0 0.0
        %494 = vmatprep.subr.mxu0 0.0
        %495 = vmatpush1.msra.mxu0 0.0
        %496 = vmatprep.subr.mxu0 0.0
        %497 = vmatpush1.msra.mxu0 0.0
        %498 = vmatprep.subr.mxu0 0.0
        %499 = vmatpush1.msra.mxu0 0.0
        %500 = vmatprep.subr.mxu0 0.0
        %501 = vmatpush1.msra.mxu0 0.0
        %502 = vmatprep.subr.mxu0 0.0
        %503 = vmatpush1.msra.mxu0 0.0
        %504 = vmatprep.subr.mxu0 0.0
        %505 = vmatpush1.msra.mxu0 0.0
        %506 = vmatprep.subr.mxu0 0.0
        %507 = vmatpush1.msra.mxu0 0.0
        %508 = vmatprep.subr.mxu0 0.0
        %509 = vmatpush1.msra.mxu0 0.0
        %510 = vmatprep.subr.mxu0 0.0
        %511 = vmatpush1.msra.mxu0 0.0
        %512 = vmatprep.subr.mxu0 0.0
        %513 = vmatpush1.msra.mxu0 0.0
        %514 = vmatprep.subr.mxu0 0.0
        %515 = vmatpush1.msra.mxu0 0.0
        %516 = vmatprep.subr.mxu0 0.0
        %517 = vmatpush1.msra.mxu0 0.0
        %518 = vmatprep.subr.mxu0 0.0
        %519 = vmatpush1.msra.mxu0 0.0
        %520 = vmatprep.subr.mxu0 0.0
        %521 = vmatpush1.msra.mxu0 0.0
        %522 = vmatprep.subr.mxu0 0.0
        %523 = vmatpush1.msra.mxu0 0.0
        %524 = vmatprep.subr.mxu0 0.0
        %525 = vmatpush1.msra.mxu0 0.0
        %526 = vmatprep.mubr.f32.mxu0 0.0
        %527 = vmatmul.mubr.f32.gmra.mrb[0].mxu0 %v371
        %v528 = vpop.f32.mrb[0].mxu0
        %v529 = vadd.f32 %v460, %v528
        %v530 = vpop.f32.mrb[0].mxu0
        %531 = vmatprep.mubr.f32.mxu0 0.0
        %532 = vmatmul.mubr.f32.gmra.mrb[0].mxu0 %v374
        %v533 = vpop.f32.mrb[0].mxu0
        %v534 = vadd.f32 %v460, %v533
        %v535 = vpop.f32.mrb[0].mxu0
        %536 = vdwg.mxu0
        %v537 = vxor.u32 %v529, 2147483648
        %v538 = vxor.u32 %v534, 2147483648
        %v539 = vmul.f32 %v537, 1.442695
        %v540 = vpow.pop %v539
        %v541 = vmul.f32 %v538, 1.442695
        %v542 = vpow.pop %v541
        %v543 = vadd.f32 %v540, 1.0
        %v544 = vadd.f32 %v542, 1.0
        %v545 = vrcp.pop %v543
        %v546 = vmul.f32 1.0, %v545
        %v547 = vrcp.pop %v544
        %v548 = vmul.f32 1.0, %v547
        %v549 = vtanh.pop %v443
        %v550 = vtanh.pop %v448
        %v551 = vmul.f32 %v546, %v549
        %v552 = vmul.f32 %v548, %v550
        %553 = vst.msk [vmem:[%s333] sm:$0xff] %vm369, %v443
        %554 = vst.msk [vmem:[%s333 + $0x8] sm:$0xff] %vm369, %v448
        %555 = vst.msk [vmem:[%s340] sm:$0xff] %vm369, %v551
        %556 = vst.msk [vmem:[%s340 + $0x8] sm:$0xff] %vm369, %v552
        %s557 = sand.u32 %s147, 1
        %s558 = scalar_lea.sflag [#allocation4], %s557
        %s559 = sand.u32 %s147, 1
        %s560 = smul.addr %s559, 16
        %s561 = scalar_lea.vmem [#allocation11], %s560
        %s562 = sand.u32 %s173, 1
        %s563 = scalar_lea.sflag [#allocation13], %s562
        %s564 = sand.u32 %s173, 1
        %s565 = smul.addr %s564, 16
        %s566 = scalar_lea.vmem [#allocation12], %s565
        // Predicated region
        $region61: #{binary_tree_leaf_forward.1} parent=39 // pred_check
          %p567 = pneg %p157
        $region62: #{binary_tree_leaf_forward.1} parent=39 // pred_check_branch
          %569 = sbr.rel (%p567) target = $region64
        $region63: #{binary_tree_leaf_forward.1} parent=39 // pred_region
          %s570 = smul.u32 2, %s29
          %s571 = ssub.s32 7, %s570
          %p572 = scmp.lt.s32.totalorder %s571, 2
          %s573 = scalar_select %p572, %s571, 2
          %s574 = smul.u32 128, %s573
          %s576 = ssub.s32 256, %s574
          %577 = vsyncadd %s558, %s576
          %p578 = scmp.ne.s32.totalorder 0, %s574
          %s579 = smul.addr %s570, 128
          %s580 = scalar_lea.hbm %s5, %s579
          %s581 = smul.u32 8, %s573
          %s582 = sshll.u32 %s561, 4
          %s583 = int_to_ptr.vmem [resolvable:$true] %s582
          %s584 = sshll.u32 %s581, 4
          %588 = dma.vmem_to_hbm [thread:$0]  (%p578), %s583, %s584, %s580, %s558, 128, 128, 8
        $region64: #{binary_tree_leaf_forward.1} parent=39 // pred_fallthru
          _
        // Predicated region
        $region65: #{binary_tree_leaf_forward.1} parent=39 // pred_check
          %p589 = pneg %p183
        $region66: #{binary_tree_leaf_forward.1} parent=39 // pred_check_branch
          %591 = sbr.rel (%p589) target = $region68
        $region67: #{binary_tree_leaf_forward.1} parent=39 // pred_region
          %s592 = smul.u32 2, %s29
          %s593 = ssub.s32 7, %s592
          %p594 = scmp.lt.s32.totalorder %s593, 2
          %s595 = scalar_select %p594, %s593, 2
          %s596 = smul.u32 128, %s595
          %s598 = ssub.s32 256, %s596
          %599 = vsyncadd %s563, %s598
          %p600 = scmp.ne.s32.totalorder 0, %s596
          %s601 = smul.addr %s592, 128
          %s602 = scalar_lea.hbm %s6, %s601
          %s603 = smul.u32 8, %s595
          %s604 = sshll.u32 %s566, 4
          %s605 = int_to_ptr.vmem [resolvable:$true] %s604
          %s606 = sshll.u32 %s603, 4
          %610 = dma.vmem_to_hbm [thread:$0]  (%p600), %s605, %s606, %s602, %s563, 128, 128, 8
        $region68: #{binary_tree_leaf_forward.1} parent=39 // pred_fallthru
          _
      $region40: #{binary_tree_leaf_forward.1} parent=5 // pred_fallthru
        _
      %p611 = scmp.le.s32.totalorder 2, %s24
      // Predicated region
      $region69: #{binary_tree_leaf_forward.1} parent=5 // pred_check
        %p612 = pneg %p611
      $region70: #{binary_tree_leaf_forward.1} parent=5 // pred_check_branch
        %614 = sbr.rel (%p612) target = $region72
      $region71: #{binary_tree_leaf_forward.1} parent=5 // pred_region
        %s615 = ssub.s32 %s24, 2
        // Predicated region
        $region73: #{binary_tree_leaf_forward.1} parent=71 // pred_check
          %p616 = pneg %p163
        $region74: #{binary_tree_leaf_forward.1} parent=71 // pred_check_branch
          %618 = sbr.rel (%p616) target = $region76
        $region75: #{binary_tree_leaf_forward.1} parent=71 // pred_region
          %s619 = sand.u32 %s148, 1
          %s620 = scalar_lea.sflag [#allocation4], %s619
          %s621 = sand.u32 %s148, 1
          %s622 = smul.addr %s621, 16
          %s623 = scalar_lea.vmem [#allocation11], %s622
          %624 = dma.done %s620, 256
        $region76: #{binary_tree_leaf_forward.1} parent=71 // pred_fallthru
          _
        // Predicated region
        $region77: #{binary_tree_leaf_forward.1} parent=71 // pred_check
          %p625 = pneg %p189
        $region78: #{binary_tree_leaf_forward.1} parent=71 // pred_check_branch
          %627 = sbr.rel (%p625) target = $region80
        $region79: #{binary_tree_leaf_forward.1} parent=71 // pred_region
          %s628 = sand.u32 %s174, 1
          %s629 = scalar_lea.sflag [#allocation13], %s628
          %s630 = sand.u32 %s174, 1
          %s631 = smul.addr %s630, 16
          %s632 = scalar_lea.vmem [#allocation12], %s631
          %633 = dma.done %s629, 256
        $region80: #{binary_tree_leaf_forward.1} parent=71 // pred_fallthru
          _
      $region72: #{binary_tree_leaf_forward.1} parent=5 // pred_fallthru
        _
    $region6: #{binary_tree_leaf_forward.1} parent=1 // loop_footer
      %s28 = sadd.s32 1, %s24
    $region7: #{binary_tree_leaf_forward.1} parent=1 // loop_footer_branch
      %23 = sbr.rel target = $region3
    $region8: #{binary_tree_leaf_forward.1} parent=1 // loop_exit
      _
    %634 = vsyncpa [#allocation3], 1
    %s635 = scalar_lea.sflag [#allocation3], 1
    %636 = vsyncpa %s635, 1
    %637 = vsyncpa [#allocation6], 1
    %638 = vsyncpa [#allocation9], 1
    %639 = vsyncpa [#allocation4], 1
    %s640 = scalar_lea.sflag [#allocation4], 1
    %641 = vsyncpa %s640, 1
    %642 = vsyncpa [#allocation13], 1
    %s643 = scalar_lea.sflag [#allocation13], 1
    %644 = vsyncpa %s643, 1

</llo_original>
